<compile_context>
chip_gen: v6e
topology: v6e:2x2x1
jax: 0.10.0
libtpu: 0.0.40
codegen_flags: <defaults>
</compile_context>

<pallas_src>
import functools

import jax
import jax.numpy as jnp
from jax.experimental import pallas as pl
from jax.experimental.pallas import tpu as pltpu

NUM_EMB = 14
EMB_DIM = 4
BOARD = 64
OTHER = 5
IN_FEATS = BOARD + OTHER            # 69 columns of x
FEAT = BOARD * EMB_DIM + OTHER      # 261 (only used by the reference)
H1 = 128
H2 = 64
OUT = 1

TB_MAX = 2048                       # batch-tile rows (fits default scoped VMEM
                                    # on v5e/v6e/v7x; raise with vmem_limit_bytes
                                    # if you want bigger tiles)


def _round_up(n, m):
    return ((n + m - 1) // m) * m


def _fused_kernel(x_ref, t2_ref, w1o_ref, b1_ref, w2_ref, b2_ref, w3_ref,
                  b3_ref, o_ref):
    xb = x_ref[...]                                  # (TB, 69) f32
    board = xb[:, :BOARD]                            # piece ids (exact small ints in f32)
    other = xb[:, BOARD:IN_FEATS]                    # (TB, 5) f32

    # ---- layer 1: fused embedding lookup as one-hot matmul on the MXU -----
    # onehot[b, p*64 + s] = (board[b, s] == p); matches T2 row ordering.
    parts = [
        jnp.where(board == jnp.float32(p), 1.0, 0.0).astype(jnp.bfloat16)
        for p in range(NUM_EMB)
    ]
    onehot = jnp.concatenate(parts, axis=-1)         # (TB, 896) bf16
    h1 = jnp.dot(onehot, t2_ref[...], preferred_element_type=jnp.float32)
    h1 = h1 + jnp.dot(other, w1o_ref[...], preferred_element_type=jnp.float32)
    h1 = jnp.maximum(h1 + b1_ref[...], 0.0)          # (TB, 128) f32

    # ---- layer 2: bf16 MXU matmul, f32 accumulation ------------------------
    h2 = jnp.dot(h1.astype(jnp.bfloat16), w2_ref[...],
                 preferred_element_type=jnp.float32)
    h2 = jnp.maximum(h2 + b2_ref[...], 0.0)          # (TB, 64) f32

    # ---- layer 3: lane-width-1 output -> VPU multiply + lane reduction -----
    o = jnp.sum(h2 * w3_ref[...], axis=-1, keepdims=True) + b3_ref[...]
    o_ref[...] = o.astype(o_ref.dtype)


def prepare_params(params):
    """One-time preprocessing of module parameters into kernel operands."""
    emb_table, w1, b1, w2, b2, w3, b3 = params
    # T2[p*64 + s, :] = emb_table[p, :] @ w1[4s:4s+4, :]
    w1_emb = w1[:BOARD * EMB_DIM].reshape(BOARD, EMB_DIM, H1)      # (64, 4, 128)
    t2 = jnp.einsum('pd,sdh->psh', emb_table, w1_emb)              # (14, 64, 128)
    t2 = t2.reshape(NUM_EMB * BOARD, H1).astype(jnp.bfloat16)      # (896, 128)
    w1o = w1[BOARD * EMB_DIM:].astype(jnp.float32)                 # (5, 128)
    return (t2,
            w1o,
            b1.reshape(1, H1).astype(jnp.float32),
            w2.astype(jnp.bfloat16),                               # (128, 64)
            b2.reshape(1, H2).astype(jnp.float32),
            w3.reshape(1, H2).astype(jnp.float32),                 # row vector
            b3.reshape(1, OUT).astype(jnp.float32))


@functools.partial(jax.jit, static_argnums=())
def chess_eval_forward(x, kernel_params):
    """x: (B, 69) f32 (first 64 cols are integer piece ids). Returns (B, 1)."""
    t2, w1o, b1, w2, b2, w3r, b3 = kernel_params
    B = x.shape[0]
    tb = min(TB_MAX, _round_up(max(B, 1), 8))
    grid = (pl.cdiv(B, tb),)
    # NOTE: rows of a final partial tile compute on padded data; Pallas discards
    # the out-of-bounds part of the output block, so results stay correct.

    def row_spec(shape):
        return pl.BlockSpec(shape, lambda i: (i, 0))

    def const_spec(a):  # weights/biases: VMEM-resident, never re-DMA'd
        return pl.BlockSpec(a.shape, lambda i: (0, 0))

    return pl.pallas_call(
        _fused_kernel,
        out_shape=jax.ShapeDtypeStruct((B, OUT), jnp.float32),
        grid=grid,
        in_specs=[row_spec((tb, IN_FEATS)),
                  const_spec(t2), const_spec(w1o), const_spec(b1),
                  const_spec(w2), const_spec(b2), const_spec(w3r),
                  const_spec(b3)],
        out_specs=row_spec((tb, OUT)),
        compiler_params=pltpu.CompilerParams(
            dimension_semantics=("parallel",),          # 2-TC sharding on v7x
            vmem_limit_bytes=32 * 1024 * 1024),         # covers v5e's 16 MiB default
    )(x, t2, w1o, b1, w2, b2, w3r, b3)


def init_params(key):
    ks = jax.random.split(key, 7)
    emb_table = jax.random.normal(ks[0], (NUM_EMB, EMB_DIM), jnp.float32)
    # Weights stored as (in, out) == PyTorch W.T; biases kept 2-D.
    w1 = jax.random.normal(ks[1], (FEAT, H1), jnp.float32) * 0.05
    b1 = jax.random.normal(ks[2], (1, H1), jnp.float32) * 0.05
    w2 = jax.random.normal(ks[3], (H1, H2), jnp.float32) * 0.05
    b2 = jax.random.normal(ks[4], (1, H2), jnp.float32) * 0.05
    w3 = jax.random.normal(ks[5], (H2, OUT), jnp.float32) * 0.05
    b3 = jax.random.normal(ks[6], (1, OUT), jnp.float32) * 0.05
    return (emb_table, w1, b1, w2, b2, w3, b3)


def reference_forward(x, params):
    """Pure f32 reference mirroring the PyTorch module exactly."""
    emb_table, w1, b1, w2, b2, w3, b3 = params
    board = x[:, :BOARD].astype(jnp.int32)
    other = x[:, BOARD:]
    emb = jnp.take(emb_table, board, axis=0).reshape(x.shape[0], -1)
    feat = jnp.concatenate([emb, other], axis=1)
    h1 = jnp.maximum(feat @ w1 + b1, 0.0)
    h2 = jnp.maximum(h1 @ w2 + b2, 0.0)
    return h2 @ w3 + b3


if __name__ == "__main__":
    key = jax.random.PRNGKey(0)
    k_board, k_other, k_params = jax.random.split(key, 3)

    B = 8
    board_ids = jax.random.randint(k_board, (B, BOARD), 0, NUM_EMB)
    other_feats = jax.random.normal(k_other, (B, OTHER), jnp.float32)
    x = jnp.concatenate([board_ids.astype(jnp.float32), other_feats], axis=1)  # (8, 69)

    params = init_params(k_params)
    kparams = prepare_params(params)

    out = chess_eval_forward(x, kparams)
    out = jax.block_until_ready(out)

    ref = reference_forward(x, params)
    assert out.shape == (B, OUT)
    # bf16 weights / table -> loosened tolerance vs the f32 reference.
    assert jnp.allclose(out, ref, atol=2e-2, rtol=2e-2)

    print("KERNEL_OK")
</pallas_src>

<mosaic_0001>
module attributes {stable_mosaic.version = 11 : i64} {
  func.func @_fused_kernel(%arg0: i32, %arg1: memref<8x69xf32, #tpu.memory_space<vmem>>, %arg2: memref<896x128xbf16, #tpu.memory_space<vmem>>, %arg3: memref<5x128xf32, #tpu.memory_space<vmem>>, %arg4: memref<1x128xf32, #tpu.memory_space<vmem>>, %arg5: memref<128x64xbf16, #tpu.memory_space<vmem>>, %arg6: memref<1x64xf32, #tpu.memory_space<vmem>>, %arg7: memref<1x64xf32, #tpu.memory_space<vmem>>, %arg8: memref<1x1xf32, #tpu.memory_space<vmem>>, %arg9: memref<8x1xf32, #tpu.memory_space<vmem>>) attributes {dimension_semantics = [#tpu.dimension_semantics<parallel>], iteration_bounds = array<i64: 1>, scalar_prefetch = 0 : i64, scratch_operands = 0 : i64, tpu.core_type = #tpu.core_type<tc>, window_params = [{transform_indices = @transform_0, window_bounds = array<i64: 8, 69>}, {pipeline_mode = #tpu.pipeline_mode<synchronous>, transform_indices = @transform_1, window_bounds = array<i64: 896, 128>}, {pipeline_mode = #tpu.pipeline_mode<synchronous>, transform_indices = @transform_2, window_bounds = array<i64: 5, 128>}, {pipeline_mode = #tpu.pipeline_mode<synchronous>, transform_indices = @transform_3, window_bounds = array<i64: 1, 128>}, {pipeline_mode = #tpu.pipeline_mode<synchronous>, transform_indices = @transform_4, window_bounds = array<i64: 128, 64>}, {pipeline_mode = #tpu.pipeline_mode<synchronous>, transform_indices = @transform_5, window_bounds = array<i64: 1, 64>}, {pipeline_mode = #tpu.pipeline_mode<synchronous>, transform_indices = @transform_6, window_bounds = array<i64: 1, 64>}, {pipeline_mode = #tpu.pipeline_mode<synchronous>, transform_indices = @transform_7, window_bounds = array<i64: 1, 1>}, {transform_indices = @transform_8, window_bounds = array<i64: 8, 1>}]} {
    %c0 = arith.constant 0 : index
    %c0_0 = arith.constant 0 : index
    %0 = vector.load %arg1[%c0, %c0_0] : memref<8x69xf32, #tpu.memory_space<vmem>>, vector<8x69xf32>
    %1 = vector.extract_strided_slice %0 {offsets = [0, 0], sizes = [8, 64], strides = [1, 1]} : vector<8x69xf32> to vector<8x64xf32>
    %2 = vector.extract_strided_slice %0 {offsets = [0, 64], sizes = [8, 5], strides = [1, 1]} : vector<8x69xf32> to vector<8x5xf32>
    %cst = arith.constant 0.000000e+00 : f32
    %3 = vector.broadcast %cst : f32 to vector<8x64xf32>
    %4 = arith.cmpf oeq, %1, %3 : vector<8x64xf32>
    %cst_1 = arith.constant 1.000000e+00 : f32
    %cst_2 = arith.constant 0.000000e+00 : f32
    %5 = vector.broadcast %cst_1 : f32 to vector<8x64xf32>
    %6 = vector.broadcast %cst_2 : f32 to vector<8x64xf32>
    %7 = arith.select %4, %5, %6 : vector<8x64xi1>, vector<8x64xf32>
    %8 = arith.truncf %7 : vector<8x64xf32> to vector<8x64xbf16>
    %cst_3 = arith.constant 1.000000e+00 : f32
    %9 = vector.broadcast %cst_3 : f32 to vector<8x64xf32>
    %10 = arith.cmpf oeq, %1, %9 : vector<8x64xf32>
    %cst_4 = arith.constant 1.000000e+00 : f32
    %cst_5 = arith.constant 0.000000e+00 : f32
    %11 = vector.broadcast %cst_4 : f32 to vector<8x64xf32>
    %12 = vector.broadcast %cst_5 : f32 to vector<8x64xf32>
    %13 = arith.select %10, %11, %12 : vector<8x64xi1>, vector<8x64xf32>
    %14 = arith.truncf %13 : vector<8x64xf32> to vector<8x64xbf16>
    %cst_6 = arith.constant 2.000000e+00 : f32
    %15 = vector.broadcast %cst_6 : f32 to vector<8x64xf32>
    %16 = arith.cmpf oeq, %1, %15 : vector<8x64xf32>
    %cst_7 = arith.constant 1.000000e+00 : f32
    %cst_8 = arith.constant 0.000000e+00 : f32
    %17 = vector.broadcast %cst_7 : f32 to vector<8x64xf32>
    %18 = vector.broadcast %cst_8 : f32 to vector<8x64xf32>
    %19 = arith.select %16, %17, %18 : vector<8x64xi1>, vector<8x64xf32>
    %20 = arith.truncf %19 : vector<8x64xf32> to vector<8x64xbf16>
    %cst_9 = arith.constant 3.000000e+00 : f32
    %21 = vector.broadcast %cst_9 : f32 to vector<8x64xf32>
    %22 = arith.cmpf oeq, %1, %21 : vector<8x64xf32>
    %cst_10 = arith.constant 1.000000e+00 : f32
    %cst_11 = arith.constant 0.000000e+00 : f32
    %23 = vector.broadcast %cst_10 : f32 to vector<8x64xf32>
    %24 = vector.broadcast %cst_11 : f32 to vector<8x64xf32>
    %25 = arith.select %22, %23, %24 : vector<8x64xi1>, vector<8x64xf32>
    %26 = arith.truncf %25 : vector<8x64xf32> to vector<8x64xbf16>
    %cst_12 = arith.constant 4.000000e+00 : f32
    %27 = vector.broadcast %cst_12 : f32 to vector<8x64xf32>
    %28 = arith.cmpf oeq, %1, %27 : vector<8x64xf32>
    %cst_13 = arith.constant 1.000000e+00 : f32
    %cst_14 = arith.constant 0.000000e+00 : f32
    %29 = vector.broadcast %cst_13 : f32 to vector<8x64xf32>
    %30 = vector.broadcast %cst_14 : f32 to vector<8x64xf32>
    %31 = arith.select %28, %29, %30 : vector<8x64xi1>, vector<8x64xf32>
    %32 = arith.truncf %31 : vector<8x64xf32> to vector<8x64xbf16>
    %cst_15 = arith.constant 5.000000e+00 : f32
    %33 = vector.broadcast %cst_15 : f32 to vector<8x64xf32>
    %34 = arith.cmpf oeq, %1, %33 : vector<8x64xf32>
    %cst_16 = arith.constant 1.000000e+00 : f32
    %cst_17 = arith.constant 0.000000e+00 : f32
    %35 = vector.broadcast %cst_16 : f32 to vector<8x64xf32>
    %36 = vector.broadcast %cst_17 : f32 to vector<8x64xf32>
    %37 = arith.select %34, %35, %36 : vector<8x64xi1>, vector<8x64xf32>
    %38 = arith.truncf %37 : vector<8x64xf32> to vector<8x64xbf16>
    %cst_18 = arith.constant 6.000000e+00 : f32
    %39 = vector.broadcast %cst_18 : f32 to vector<8x64xf32>
    %40 = arith.cmpf oeq, %1, %39 : vector<8x64xf32>
    %cst_19 = arith.constant 1.000000e+00 : f32
    %cst_20 = arith.constant 0.000000e+00 : f32
    %41 = vector.broadcast %cst_19 : f32 to vector<8x64xf32>
    %42 = vector.broadcast %cst_20 : f32 to vector<8x64xf32>
    %43 = arith.select %40, %41, %42 : vector<8x64xi1>, vector<8x64xf32>
    %44 = arith.truncf %43 : vector<8x64xf32> to vector<8x64xbf16>
    %cst_21 = arith.constant 7.000000e+00 : f32
    %45 = vector.broadcast %cst_21 : f32 to vector<8x64xf32>
    %46 = arith.cmpf oeq, %1, %45 : vector<8x64xf32>
    %cst_22 = arith.constant 1.000000e+00 : f32
    %cst_23 = arith.constant 0.000000e+00 : f32
    %47 = vector.broadcast %cst_22 : f32 to vector<8x64xf32>
    %48 = vector.broadcast %cst_23 : f32 to vector<8x64xf32>
    %49 = arith.select %46, %47, %48 : vector<8x64xi1>, vector<8x64xf32>
    %50 = arith.truncf %49 : vector<8x64xf32> to vector<8x64xbf16>
    %cst_24 = arith.constant 8.000000e+00 : f32
    %51 = vector.broadcast %cst_24 : f32 to vector<8x64xf32>
    %52 = arith.cmpf oeq, %1, %51 : vector<8x64xf32>
    %cst_25 = arith.constant 1.000000e+00 : f32
    %cst_26 = arith.constant 0.000000e+00 : f32
    %53 = vector.broadcast %cst_25 : f32 to vector<8x64xf32>
    %54 = vector.broadcast %cst_26 : f32 to vector<8x64xf32>
    %55 = arith.select %52, %53, %54 : vector<8x64xi1>, vector<8x64xf32>
    %56 = arith.truncf %55 : vector<8x64xf32> to vector<8x64xbf16>
    %cst_27 = arith.constant 9.000000e+00 : f32
    %57 = vector.broadcast %cst_27 : f32 to vector<8x64xf32>
    %58 = arith.cmpf oeq, %1, %57 : vector<8x64xf32>
    %cst_28 = arith.constant 1.000000e+00 : f32
    %cst_29 = arith.constant 0.000000e+00 : f32
    %59 = vector.broadcast %cst_28 : f32 to vector<8x64xf32>
    %60 = vector.broadcast %cst_29 : f32 to vector<8x64xf32>
    %61 = arith.select %58, %59, %60 : vector<8x64xi1>, vector<8x64xf32>
    %62 = arith.truncf %61 : vector<8x64xf32> to vector<8x64xbf16>
    %cst_30 = arith.constant 1.000000e+01 : f32
    %63 = vector.broadcast %cst_30 : f32 to vector<8x64xf32>
    %64 = arith.cmpf oeq, %1, %63 : vector<8x64xf32>
    %cst_31 = arith.constant 1.000000e+00 : f32
    %cst_32 = arith.constant 0.000000e+00 : f32
    %65 = vector.broadcast %cst_31 : f32 to vector<8x64xf32>
    %66 = vector.broadcast %cst_32 : f32 to vector<8x64xf32>
    %67 = arith.select %64, %65, %66 : vector<8x64xi1>, vector<8x64xf32>
    %68 = arith.truncf %67 : vector<8x64xf32> to vector<8x64xbf16>
    %cst_33 = arith.constant 1.100000e+01 : f32
    %69 = vector.broadcast %cst_33 : f32 to vector<8x64xf32>
    %70 = arith.cmpf oeq, %1, %69 : vector<8x64xf32>
    %cst_34 = arith.constant 1.000000e+00 : f32
    %cst_35 = arith.constant 0.000000e+00 : f32
    %71 = vector.broadcast %cst_34 : f32 to vector<8x64xf32>
    %72 = vector.broadcast %cst_35 : f32 to vector<8x64xf32>
    %73 = arith.select %70, %71, %72 : vector<8x64xi1>, vector<8x64xf32>
    %74 = arith.truncf %73 : vector<8x64xf32> to vector<8x64xbf16>
    %cst_36 = arith.constant 1.200000e+01 : f32
    %75 = vector.broadcast %cst_36 : f32 to vector<8x64xf32>
    %76 = arith.cmpf oeq, %1, %75 : vector<8x64xf32>
    %cst_37 = arith.constant 1.000000e+00 : f32
    %cst_38 = arith.constant 0.000000e+00 : f32
    %77 = vector.broadcast %cst_37 : f32 to vector<8x64xf32>
    %78 = vector.broadcast %cst_38 : f32 to vector<8x64xf32>
    %79 = arith.select %76, %77, %78 : vector<8x64xi1>, vector<8x64xf32>
    %80 = arith.truncf %79 : vector<8x64xf32> to vector<8x64xbf16>
    %cst_39 = arith.constant 1.300000e+01 : f32
    %81 = vector.broadcast %cst_39 : f32 to vector<8x64xf32>
    %82 = arith.cmpf oeq, %1, %81 : vector<8x64xf32>
    %cst_40 = arith.constant 1.000000e+00 : f32
    %cst_41 = arith.constant 0.000000e+00 : f32
    %83 = vector.broadcast %cst_40 : f32 to vector<8x64xf32>
    %84 = vector.broadcast %cst_41 : f32 to vector<8x64xf32>
    %85 = arith.select %82, %83, %84 : vector<8x64xi1>, vector<8x64xf32>
    %86 = arith.truncf %85 : vector<8x64xf32> to vector<8x64xbf16>
    %87 = tpu.concatenate %8, %14, %20, %26, %32, %38, %44, %50, %56, %62, %68, %74, %80, %86 in 1 : vector<8x64xbf16>, vector<8x64xbf16>, vector<8x64xbf16>, vector<8x64xbf16>, vector<8x64xbf16>, vector<8x64xbf16>, vector<8x64xbf16>, vector<8x64xbf16>, vector<8x64xbf16>, vector<8x64xbf16>, vector<8x64xbf16>, vector<8x64xbf16>, vector<8x64xbf16>, vector<8x64xbf16> -> vector<8x896xbf16>
    %c0_42 = arith.constant 0 : index
    %c0_43 = arith.constant 0 : index
    %88 = vector.load %arg2[%c0_42, %c0_43] : memref<896x128xbf16, #tpu.memory_space<vmem>>, vector<896x128xbf16>
    %cst_44 = arith.constant dense<0.000000e+00> : vector<8x128xf32>
    %89 = tpu.matmul %87, %88, %cst_44 {dimension_numbers = #tpu.dot_dimension_numbers<[1], [0], [0], [1], [0, 0, 1, 1], [], []>} : vector<8x896xbf16>, vector<896x128xbf16>, vector<8x128xf32> -> vector<8x128xf32>
    %c0_45 = arith.constant 0 : index
    %c0_46 = arith.constant 0 : index
    %90 = vector.load %arg3[%c0_45, %c0_46] : memref<5x128xf32, #tpu.memory_space<vmem>>, vector<5x128xf32>
    %cst_47 = arith.constant dense<0.000000e+00> : vector<8x128xf32>
    %91 = tpu.matmul %2, %90, %cst_47 {dimension_numbers = #tpu.dot_dimension_numbers<[1], [0], [0], [1], [0, 0, 1, 1], [], []>} : vector<8x5xf32>, vector<5x128xf32>, vector<8x128xf32> -> vector<8x128xf32>
    %92 = arith.addf %89, %91 : vector<8x128xf32>
    %c0_48 = arith.constant 0 : index
    %c0_49 = arith.constant 0 : index
    %93 = vector.load %arg4[%c0_48, %c0_49] : memref<1x128xf32, #tpu.memory_space<vmem>>, vector<1x128xf32>
    %94 = vector.broadcast %93 : vector<1x128xf32> to vector<8x128xf32>
    %95 = arith.addf %92, %94 : vector<8x128xf32>
    %cst_50 = arith.constant 0.000000e+00 : f32
    %96 = vector.broadcast %cst_50 : f32 to vector<8x128xf32>
    %97 = arith.maximumf %95, %96 : vector<8x128xf32>
    %98 = arith.truncf %97 : vector<8x128xf32> to vector<8x128xbf16>
    %c0_51 = arith.constant 0 : index
    %c0_52 = arith.constant 0 : index
    %99 = vector.load %arg5[%c0_51, %c0_52] : memref<128x64xbf16, #tpu.memory_space<vmem>>, vector<128x64xbf16>
    %cst_53 = arith.constant dense<0.000000e+00> : vector<8x64xf32>
    %100 = tpu.matmul %98, %99, %cst_53 {dimension_numbers = #tpu.dot_dimension_numbers<[1], [0], [0], [1], [0, 0, 1, 1], [], []>} : vector<8x128xbf16>, vector<128x64xbf16>, vector<8x64xf32> -> vector<8x64xf32>
    %c0_54 = arith.constant 0 : index
    %c0_55 = arith.constant 0 : index
    %101 = vector.load %arg6[%c0_54, %c0_55] : memref<1x64xf32, #tpu.memory_space<vmem>>, vector<1x64xf32>
    %102 = vector.broadcast %101 : vector<1x64xf32> to vector<8x64xf32>
    %103 = arith.addf %100, %102 : vector<8x64xf32>
    %cst_56 = arith.constant 0.000000e+00 : f32
    %104 = vector.broadcast %cst_56 : f32 to vector<8x64xf32>
    %105 = arith.maximumf %103, %104 : vector<8x64xf32>
    %c0_57 = arith.constant 0 : index
    %c0_58 = arith.constant 0 : index
    %106 = vector.load %arg7[%c0_57, %c0_58] : memref<1x64xf32, #tpu.memory_space<vmem>>, vector<1x64xf32>
    %107 = vector.broadcast %106 : vector<1x64xf32> to vector<8x64xf32>
    %108 = arith.mulf %105, %107 : vector<8x64xf32>
    %cst_59 = arith.constant dense<0.000000e+00> : vector<8xf32>
    %109 = vector.multi_reduction <add>, %108, %cst_59 [1] : vector<8x64xf32> to vector<8xf32>
    %110 = vector.shape_cast %109 : vector<8xf32> to vector<8x1xf32>
    %c0_60 = arith.constant 0 : index
    %c0_61 = arith.constant 0 : index
    %111 = vector.load %arg8[%c0_60, %c0_61] : memref<1x1xf32, #tpu.memory_space<vmem>>, vector<1x1xf32>
    %112 = vector.broadcast %111 : vector<1x1xf32> to vector<8x1xf32>
    %113 = arith.addf %110, %112 : vector<8x1xf32>
    %c0_62 = arith.constant 0 : index
    %c0_63 = arith.constant 0 : index
    %114 = vector.load %arg9[%c0_62, %c0_63] : memref<8x1xf32, #tpu.memory_space<vmem>>, vector<8x1xf32>
    tpu.vector_store %arg9[%c0_62, %c0_63], %113 {strides = array<i32>} : memref<8x1xf32, #tpu.memory_space<vmem>>, vector<8x1xf32>,
    return
  }
  func.func @transform_0(%arg0: i32) -> (i32, i32) {
    %c0_i32 = arith.constant 0 : i32
    %c0_i32_0 = arith.constant 0 : i32
    return %arg0, %c0_i32 : i32, i32
  }
  func.func @transform_1(%arg0: i32) -> (i32, i32) {
    %c0_i32 = arith.constant 0 : i32
    %c0_i32_0 = arith.constant 0 : i32
    %c0_i32_1 = arith.constant 0 : i32
    return %c0_i32, %c0_i32_0 : i32, i32
  }
  func.func @transform_2(%arg0: i32) -> (i32, i32) {
    %c0_i32 = arith.constant 0 : i32
    %c0_i32_0 = arith.constant 0 : i32
    %c0_i32_1 = arith.constant 0 : i32
    return %c0_i32, %c0_i32_0 : i32, i32
  }
  func.func @transform_3(%arg0: i32) -> (i32, i32) {
    %c0_i32 = arith.constant 0 : i32
    %c0_i32_0 = arith.constant 0 : i32
    %c0_i32_1 = arith.constant 0 : i32
    return %c0_i32, %c0_i32_0 : i32, i32
  }
  func.func @transform_4(%arg0: i32) -> (i32, i32) {
    %c0_i32 = arith.constant 0 : i32
    %c0_i32_0 = arith.constant 0 : i32
    %c0_i32_1 = arith.constant 0 : i32
    return %c0_i32, %c0_i32_0 : i32, i32
  }
  func.func @transform_5(%arg0: i32) -> (i32, i32) {
    %c0_i32 = arith.constant 0 : i32
    %c0_i32_0 = arith.constant 0 : i32
    %c0_i32_1 = arith.constant 0 : i32
    return %c0_i32, %c0_i32_0 : i32, i32
  }
  func.func @transform_6(%arg0: i32) -> (i32, i32) {
    %c0_i32 = arith.constant 0 : i32
    %c0_i32_0 = arith.constant 0 : i32
    %c0_i32_1 = arith.constant 0 : i32
    return %c0_i32, %c0_i32_0 : i32, i32
  }
  func.func @transform_7(%arg0: i32) -> (i32, i32) {
    %c0_i32 = arith.constant 0 : i32
    %c0_i32_0 = arith.constant 0 : i32
    %c0_i32_1 = arith.constant 0 : i32
    return %c0_i32, %c0_i32_0 : i32, i32
  }
  func.func @transform_8(%arg0: i32) -> (i32, i32) {
    %c0_i32 = arith.constant 0 : i32
    %c0_i32_0 = arith.constant 0 : i32
    return %arg0, %c0_i32 : i32, i32
  }
}

</mosaic_0001>

<llo_original>
// kernel: chess_eval_forward.1
$region0: #{chess_eval_forward.1}
  #allocation0 [shape = 'u32[]', space=smem, size = 0x4, offset = 0x4, fixed_abs, tag = 'smem constant byte address 0x4 - core index']
  #allocation1 [shape = 'u32[144,128]{1,0:T(1,128)}', space=vmem, size = 0x12000, scoped, tag = 'internal scratch']
  #allocation2 [shape = 'f32[1,1]{1,0:T(1,128)S(1)}', space=vmem, size = 0x200, scoped, tag = 'scoped memory for chess_eval_forward.1']
  %s0 = inlined_call_operand.vmem [shape: f32[8,69], index: 0, kind: input, shape index: {}]
  %s1 = inlined_call_operand.hbm [shape: bf16[896,128], index: 1, kind: input, shape index: {}]
  %s2 = inlined_call_operand.vmem [shape: f32[5,128], index: 2, kind: input, shape index: {}]
  %s3 = inlined_call_operand.vmem [shape: f32[1,128], index: 3, kind: input, shape index: {}]
  %s4 = inlined_call_operand.vmem [shape: bf16[128,64], index: 4, kind: input, shape index: {}]
  %s5 = inlined_call_operand.vmem [shape: f32[1,64], index: 5, kind: input, shape index: {}]
  %s6 = inlined_call_operand.vmem [shape: f32[1,64], index: 6, kind: input, shape index: {}]
  %s7 = inlined_call_operand.<no memory space> [shape: f32[1,1], index: 7, kind: input, shape index: {}]
  %s8 = inlined_call_operand.vmem [shape: f32[8,1], index: 8, kind: output, shape index: {}]
  %s9 = sld [smem:[#allocation0]]
  $region46: #{chess_eval_forward.1} parent=0
    _
  %s11 = ssub.s32 1, %s9
  %s12 = scalar_select 0, %s11, %s9
  %v13 = vstv %s7
  %14 = vst [vmem:[#allocation2] sm:$0x1] %v13
  $region1: #{chess_eval_forward.1} parent=0
    #allocation3 [shape = 'u8[229376]{0}', space=vmem, size = 0x38000, scoped, tag = 'input window, operand 1, single buffered']
    #allocation4 [shape = 's32[1]{0}', space=sflag, size = 0x4, scoped, tag = 'scoped memory for chess_eval_forward.1']
    %15 = vsyncpa [#allocation4], 0
    // Predicated region
    $region2: #{chess_eval_forward.1} parent=1 // pred_check
      _
    $region3: #{chess_eval_forward.1} parent=1 // pred_check_branch
      %17 = sbr.rel (0) target = $region5
    $region4: #{chess_eval_forward.1} parent=1 // pred_region
      _
    $region5: #{chess_eval_forward.1} parent=1 // pred_fallthru
      _
    // Predicated region
    $region6: #{chess_eval_forward.1} parent=1 // pred_check
      _
    $region7: #{chess_eval_forward.1} parent=1 // pred_check_branch
      %19 = sbr.rel (0) target = $region9
    $region8: #{chess_eval_forward.1} parent=1 // pred_region
      %s21 = ssub.s32 7168, 7168
      %22 = vsyncadd [#allocation4], %s21
      %s23 = sshll.u32 [#allocation3], 4
      %s24 = int_to_ptr.vmem [resolvable:$true] %s23
      %29 = dma.hbm_to_vmem [thread:$0]  %s1, 7168, %s24, [#allocation4], 64, 64, 4
    $region9: #{chess_eval_forward.1} parent=1 // pred_fallthru
      _
    // Predicated region
    $region10: #{chess_eval_forward.1} parent=1 // pred_check
      _
    $region11: #{chess_eval_forward.1} parent=1 // pred_check_branch
      %31 = sbr.rel (0) target = $region13
    $region12: #{chess_eval_forward.1} parent=1 // pred_region
      _
    $region13: #{chess_eval_forward.1} parent=1 // pred_fallthru
      _
    // Predicated region
    $region14: #{chess_eval_forward.1} parent=1 // pred_check
      _
    $region15: #{chess_eval_forward.1} parent=1 // pred_check_branch
      %33 = sbr.rel (0) target = $region17
    $region16: #{chess_eval_forward.1} parent=1 // pred_region
      _
    $region17: #{chess_eval_forward.1} parent=1 // pred_fallthru
      _
    // Predicated region
    $region18: #{chess_eval_forward.1} parent=1 // pred_check
      _
    $region19: #{chess_eval_forward.1} parent=1 // pred_check_branch
      %35 = sbr.rel (0) target = $region21
    $region20: #{chess_eval_forward.1} parent=1 // pred_region
      _
    $region21: #{chess_eval_forward.1} parent=1 // pred_fallthru
      _
    // Predicated region
    $region22: #{chess_eval_forward.1} parent=1 // pred_check
      _
    $region23: #{chess_eval_forward.1} parent=1 // pred_check_branch
      %37 = sbr.rel (0) target = $region25
    $region24: #{chess_eval_forward.1} parent=1 // pred_region
      _
    $region25: #{chess_eval_forward.1} parent=1 // pred_fallthru
      _
    // Predicated region
    $region26: #{chess_eval_forward.1} parent=1 // pred_check
      _
    $region27: #{chess_eval_forward.1} parent=1 // pred_check_branch
      %39 = sbr.rel (0) target = $region29
    $region28: #{chess_eval_forward.1} parent=1 // pred_region
      _
    $region29: #{chess_eval_forward.1} parent=1 // pred_fallthru
      _
    // Predicated region
    $region30: #{chess_eval_forward.1} parent=1 // pred_check
      _
    $region31: #{chess_eval_forward.1} parent=1 // pred_check_branch
      %41 = sbr.rel (0) target = $region33
    $region32: #{chess_eval_forward.1} parent=1 // pred_region
      _
    $region33: #{chess_eval_forward.1} parent=1 // pred_fallthru
      _
    // Predicated region
    $region34: #{chess_eval_forward.1} parent=1 // pred_check
      _
    $region35: #{chess_eval_forward.1} parent=1 // pred_check_branch
      %43 = sbr.rel (0) target = $region37
    $region36: #{chess_eval_forward.1} parent=1 // pred_region
      %44 = dma.done [#allocation4], 7168
    $region37: #{chess_eval_forward.1} parent=1 // pred_fallthru
      _
    %v46 = vld [vmem:[%s0] sm:$0xff]
    %vm47 = vcmp.eq.f32.partialorder %v46, 0.0
    %v48 = vsel %vm47, 1.0, 0.0
    %v49 = vpack.c.bf16 %v48, %v48
    %vm50 = vcmp.eq.f32.partialorder %v46, 1.0
    %v51 = vsel %vm50, 1.0, 0.0
    %v52 = vpack.c.bf16 %v51, %v51
    %vm53 = vcmp.eq.f32.partialorder %v46, 2.0
    %v54 = vsel %vm53, 1.0, 0.0
    %v55 = vpack.c.bf16 %v54, %v54
    %vm56 = vcmp.eq.f32.partialorder %v46, 3.0
    %v57 = vsel %vm56, 1.0, 0.0
    %v58 = vpack.c.bf16 %v57, %v57
    %vm59 = vcmp.eq.f32.partialorder %v46, 4.0
    %v60 = vsel %vm59, 1.0, 0.0
    %v61 = vpack.c.bf16 %v60, %v60
    %vm62 = vcmp.eq.f32.partialorder %v46, 5.0
    %v63 = vsel %vm62, 1.0, 0.0
    %v64 = vpack.c.bf16 %v63, %v63
    %vm65 = vcmp.eq.f32.partialorder %v46, 6.0
    %v66 = vsel %vm65, 1.0, 0.0
    %v67 = vpack.c.bf16 %v66, %v66
    %vm68 = vcmp.eq.f32.partialorder %v46, 7.0
    %v69 = vsel %vm68, 1.0, 0.0
    %v70 = vpack.c.bf16 %v69, %v69
    %vm71 = vcmp.eq.f32.partialorder %v46, 8.0
    %v72 = vsel %vm71, 1.0, 0.0
    %v73 = vpack.c.bf16 %v72, %v72
    %vm74 = vcmp.eq.f32.partialorder %v46, 9.0
    %v75 = vsel %vm74, 1.0, 0.0
    %v76 = vpack.c.bf16 %v75, %v75
    %vm77 = vcmp.eq.f32.partialorder %v46, 10.0
    %v78 = vsel %vm77, 1.0, 0.0
    %v79 = vpack.c.bf16 %v78, %v78
    %vm80 = vcmp.eq.f32.partialorder %v46, 11.0
    %v81 = vsel %vm80, 1.0, 0.0
    %v82 = vpack.c.bf16 %v81, %v81
    %vm83 = vcmp.eq.f32.partialorder %v46, 12.0
    %v84 = vsel %vm83, 1.0, 0.0
    %v85 = vpack.c.bf16 %v84, %v84
    %vm86 = vcmp.eq.f32.partialorder %v46, 13.0
    %v87 = vsel %vm86, 1.0, 0.0
    %v88 = vpack.c.bf16 %v87, %v87
    %90 = vrot.lane.b32.xlu0 %v52, 64
    %v91 = vpop.permute.xlu0 %90
    %93 = vrot.lane.b32.xlu0 %v58, 64
    %v94 = vpop.permute.xlu0 %93
    %96 = vrot.lane.b32.xlu0 %v64, 64
    %v97 = vpop.permute.xlu0 %96
    %99 = vrot.lane.b32.xlu0 %v70, 64
    %v100 = vpop.permute.xlu0 %99
    %102 = vrot.lane.b32.xlu0 %v76, 64
    %v103 = vpop.permute.xlu0 %102
    %105 = vrot.lane.b32.xlu0 %v82, 64
    %v106 = vpop.permute.xlu0 %105
    %108 = vrot.lane.b32.xlu0 %v88, 64
    %v109 = vpop.permute.xlu0 %108
    %vm110 = vcmask 523264
    %v113 = vsel %vm110, %v49, %v91
    %v117 = vsel %vm110, %v55, %v94
    %v121 = vsel %vm110, %v61, %v97
    %v125 = vsel %vm110, %v67, %v100
    %v129 = vsel %vm110, %v73, %v103
    %v133 = vsel %vm110, %v79, %v106
    %v137 = vsel %vm110, %v85, %v109
    %v139 = vld [vmem:[#allocation3] sm:$0xf]
    %v140 = vld [vmem:[#allocation3 + $0x4] sm:$0xf]
    %v141 = vld [vmem:[#allocation3 + $0x8] sm:$0xf]
    %v142 = vld [vmem:[#allocation3 + $0xc] sm:$0xf]
    %v143 = vld [vmem:[#allocation3 + $0x10] sm:$0xf]
    %v144 = vld [vmem:[#allocation3 + $0x14] sm:$0xf]
    %v145 = vld [vmem:[#allocation3 + $0x18] sm:$0xf]
    %v146 = vld [vmem:[#allocation3 + $0x1c] sm:$0xf]
    %v147 = vld [vmem:[#allocation3 + $0x20] sm:$0xf]
    %v148 = vld [vmem:[#allocation3 + $0x24] sm:$0xf]
    %v149 = vld [vmem:[#allocation3 + $0x28] sm:$0xf]
    %v150 = vld [vmem:[#allocation3 + $0x2c] sm:$0xf]
    %v151 = vld [vmem:[#allocation3 + $0x30] sm:$0xf]
    %v152 = vld [vmem:[#allocation3 + $0x34] sm:$0xf]
    %v153 = vld [vmem:[#allocation3 + $0x38] sm:$0xf]
    %v154 = vld [vmem:[#allocation3 + $0x3c] sm:$0xf]
    %v155 = vld [vmem:[#allocation3 + $0x40] sm:$0xf]
    %v156 = vld [vmem:[#allocation3 + $0x44] sm:$0xf]
    %v157 = vld [vmem:[#allocation3 + $0x48] sm:$0xf]
    %v158 = vld [vmem:[#allocation3 + $0x4c] sm:$0xf]
    %v159 = vld [vmem:[#allocation3 + $0x50] sm:$0xf]
    %v160 = vld [vmem:[#allocation3 + $0x54] sm:$0xf]
    %v161 = vld [vmem:[#allocation3 + $0x58] sm:$0xf]
    %v162 = vld [vmem:[#allocation3 + $0x5c] sm:$0xf]
    %v163 = vld [vmem:[#allocation3 + $0x60] sm:$0xf]
    %v164 = vld [vmem:[#allocation3 + $0x64] sm:$0xf]
    %v165 = vld [vmem:[#allocation3 + $0x68] sm:$0xf]
    %v166 = vld [vmem:[#allocation3 + $0x6c] sm:$0xf]
    %v167 = vld [vmem:[#allocation3 + $0x70] sm:$0xf]
    %v168 = vld [vmem:[#allocation3 + $0x74] sm:$0xf]
    %v169 = vld [vmem:[#allocation3 + $0x78] sm:$0xf]
    %v170 = vld [vmem:[#allocation3 + $0x7c] sm:$0xf]
    %v171 = vld [vmem:[#allocation3 + $0x80] sm:$0xf]
    %v172 = vld [vmem:[#allocation3 + $0x84] sm:$0xf]
    %v173 = vld [vmem:[#allocation3 + $0x88] sm:$0xf]
    %v174 = vld [vmem:[#allocation3 + $0x8c] sm:$0xf]
    %v175 = vld [vmem:[#allocation3 + $0x90] sm:$0xf]
    %v176 = vld [vmem:[#allocation3 + $0x94] sm:$0xf]
    %v177 = vld [vmem:[#allocation3 + $0x98] sm:$0xf]
    %v178 = vld [vmem:[#allocation3 + $0x9c] sm:$0xf]
    %v179 = vld [vmem:[#allocation3 + $0xa0] sm:$0xf]
    %v180 = vld [vmem:[#allocation3 + $0xa4] sm:$0xf]
    %v181 = vld [vmem:[#allocation3 + $0xa8] sm:$0xf]
    %v182 = vld [vmem:[#allocation3 + $0xac] sm:$0xf]
    %v183 = vld [vmem:[#allocation3 + $0xb0] sm:$0xf]
    %v184 = vld [vmem:[#allocation3 + $0xb4] sm:$0xf]
    %v185 = vld [vmem:[#allocation3 + $0xb8] sm:$0xf]
    %v186 = vld [vmem:[#allocation3 + $0xbc] sm:$0xf]
    %v187 = vld [vmem:[#allocation3 + $0xc0] sm:$0xf]
    %v188 = vld [vmem:[#allocation3 + $0xc4] sm:$0xf]
    %v189 = vld [vmem:[#allocation3 + $0xc8] sm:$0xf]
    %v190 = vld [vmem:[#allocation3 + $0xcc] sm:$0xf]
    %v191 = vld [vmem:[#allocation3 + $0xd0] sm:$0xf]
    %v192 = vld [vmem:[#allocation3 + $0xd4] sm:$0xf]
    %v193 = vld [vmem:[#allocation3 + $0xd8] sm:$0xf]
    %v194 = vld [vmem:[#allocation3 + $0xdc] sm:$0xf]
    %v195 = vld [vmem:[#allocation3 + $0xe0] sm:$0xf]
    %v196 = vld [vmem:[#allocation3 + $0xe4] sm:$0xf]
    %v197 = vld [vmem:[#allocation3 + $0xe8] sm:$0xf]
    %v198 = vld [vmem:[#allocation3 + $0xec] sm:$0xf]
    %v199 = vld [vmem:[#allocation3 + $0xf0] sm:$0xf]
    %v200 = vld [vmem:[#allocation3 + $0xf4] sm:$0xf]
    %v201 = vld [vmem:[#allocation3 + $0xf8] sm:$0xf]
    %v202 = vld [vmem:[#allocation3 + $0xfc] sm:$0xf]
    %v203 = vld [vmem:[#allocation3 + $0x100] sm:$0xf]
    %v204 = vld [vmem:[#allocation3 + $0x104] sm:$0xf]
    %v205 = vld [vmem:[#allocation3 + $0x108] sm:$0xf]
    %v206 = vld [vmem:[#allocation3 + $0x10c] sm:$0xf]
    %v207 = vld [vmem:[#allocation3 + $0x110] sm:$0xf]
    %v208 = vld [vmem:[#allocation3 + $0x114] sm:$0xf]
    %v209 = vld [vmem:[#allocation3 + $0x118] sm:$0xf]
    %v210 = vld [vmem:[#allocation3 + $0x11c] sm:$0xf]
    %v211 = vld [vmem:[#allocation3 + $0x120] sm:$0xf]
    %v212 = vld [vmem:[#allocation3 + $0x124] sm:$0xf]
    %v213 = vld [vmem:[#allocation3 + $0x128] sm:$0xf]
    %v214 = vld [vmem:[#allocation3 + $0x12c] sm:$0xf]
    %v215 = vld [vmem:[#allocation3 + $0x130] sm:$0xf]
    %v216 = vld [vmem:[#allocation3 + $0x134] sm:$0xf]
    %v217 = vld [vmem:[#allocation3 + $0x138] sm:$0xf]
    %v218 = vld [vmem:[#allocation3 + $0x13c] sm:$0xf]
    %v219 = vld [vmem:[#allocation3 + $0x140] sm:$0xf]
    %v220 = vld [vmem:[#allocation3 + $0x144] sm:$0xf]
    %v221 = vld [vmem:[#allocation3 + $0x148] sm:$0xf]
    %v222 = vld [vmem:[#allocation3 + $0x14c] sm:$0xf]
    %v223 = vld [vmem:[#allocation3 + $0x150] sm:$0xf]
    %v224 = vld [vmem:[#allocation3 + $0x154] sm:$0xf]
    %v225 = vld [vmem:[#allocation3 + $0x158] sm:$0xf]
    %v226 = vld [vmem:[#allocation3 + $0x15c] sm:$0xf]
    %v227 = vld [vmem:[#allocation3 + $0x160] sm:$0xf]
    %v228 = vld [vmem:[#allocation3 + $0x164] sm:$0xf]
    %v229 = vld [vmem:[#allocation3 + $0x168] sm:$0xf]
    %v230 = vld [vmem:[#allocation3 + $0x16c] sm:$0xf]
    %v231 = vld [vmem:[#allocation3 + $0x170] sm:$0xf]
    %v232 = vld [vmem:[#allocation3 + $0x174] sm:$0xf]
    %v233 = vld [vmem:[#allocation3 + $0x178] sm:$0xf]
    %v234 = vld [vmem:[#allocation3 + $0x17c] sm:$0xf]
    %v235 = vld [vmem:[#allocation3 + $0x180] sm:$0xf]
    %v236 = vld [vmem:[#allocation3 + $0x184] sm:$0xf]
    %v237 = vld [vmem:[#allocation3 + $0x188] sm:$0xf]
    %v238 = vld [vmem:[#allocation3 + $0x18c] sm:$0xf]
    %v239 = vld [vmem:[#allocation3 + $0x190] sm:$0xf]
    %v240 = vld [vmem:[#allocation3 + $0x194] sm:$0xf]
    %v241 = vld [vmem:[#allocation3 + $0x198] sm:$0xf]
    %v242 = vld [vmem:[#allocation3 + $0x19c] sm:$0xf]
    %v243 = vld [vmem:[#allocation3 + $0x1a0] sm:$0xf]
    %v244 = vld [vmem:[#allocation3 + $0x1a4] sm:$0xf]
    %v245 = vld [vmem:[#allocation3 + $0x1a8] sm:$0xf]
    %v246 = vld [vmem:[#allocation3 + $0x1ac] sm:$0xf]
    %v247 = vld [vmem:[#allocation3 + $0x1b0] sm:$0xf]
    %v248 = vld [vmem:[#allocation3 + $0x1b4] sm:$0xf]
    %v249 = vld [vmem:[#allocation3 + $0x1b8] sm:$0xf]
    %v250 = vld [vmem:[#allocation3 + $0x1bc] sm:$0xf]
    %v251 = vld [vmem:[%s2] sm:$0x1f]
    %253 = vrot.lane.b32.xlu0 %v46, 64
    %v254 = vpop.permute.xlu0 %253
    %vm255 = vcmask 39936
    %v256 = vsel %vm255, %v254, 0
    %vm258 = vcmask 1044480
    %v260 = vsel %vm258, %v251, 0
    %262 = vmatprep.subr.mxu0 0.0
    %263 = vmatpush1.msra.mxu0 0.0
    %264 = vmatprep.subr.mxu0 0.0
    %265 = vmatpush1.msra.mxu0 0.0
    %266 = vmatprep.subr.mxu0 0.0
    %267 = vmatpush1.msra.mxu0 0.0
    %268 = vmatprep.subr.mxu0 0.0
    %269 = vmatpush1.msra.mxu0 0.0
    %270 = vmatprep.subr.mxu0 0.0
    %271 = vmatpush1.msra.mxu0 0.0
    %272 = vmatprep.subr.mxu0 0.0
    %273 = vmatpush1.msra.mxu0 0.0
    %274 = vmatprep.subr.mxu0 0.0
    %275 = vmatpush1.msra.mxu0 0.0
    %276 = vmatprep.subr.mxu0 0.0
    %277 = vmatpush1.msra.mxu0 0.0
    %278 = vmatprep.subr.mxu0 0.0
    %279 = vmatpush1.msra.mxu0 0.0
    %280 = vmatprep.subr.mxu0 0.0
    %281 = vmatpush1.msra.mxu0 0.0
    %282 = vmatprep.subr.mxu0 0.0
    %283 = vmatpush1.msra.mxu0 0.0
    %284 = vmatprep.subr.mxu0 0.0
    %285 = vmatpush1.msra.mxu0 0.0
    %286 = vmatprep.subr.mxu0 0.0
    %287 = vmatpush1.msra.mxu0 0.0
    %288 = vmatprep.subr.mxu0 0.0
    %289 = vmatpush1.msra.mxu0 0.0
    %290 = vmatprep.subr.mxu0 0.0
    %291 = vmatpush1.msra.mxu0 0.0
    %292 = vmatprep.subr.mxu0 0.0
    %293 = vmatpush1.msra.mxu0 %v260
    %294 = vmatprep.subr.mxu0 0.0
    %295 = vmatpush2.msra.mxu0 0.0
    %296 = vmatprep.subr.mxu0 0.0
    %297 = vmatpush2.msra.mxu0 0.0
    %298 = vmatprep.subr.mxu0 0.0
    %299 = vmatpush2.msra.mxu0 0.0
    %300 = vmatprep.subr.mxu0 0.0
    %301 = vmatpush2.msra.mxu0 0.0
    %302 = vmatprep.subr.mxu0 0.0
    %303 = vmatpush2.msra.mxu0 0.0
    %304 = vmatprep.subr.mxu0 0.0
    %305 = vmatpush2.msra.mxu0 0.0
    %306 = vmatprep.subr.mxu0 0.0
    %307 = vmatpush2.msra.mxu0 0.0
    %308 = vmatprep.subr.mxu0 0.0
    %309 = vmatpush2.msra.mxu0 0.0
    %310 = vmatprep.subr.mxu0 0.0
    %311 = vmatpush2.msra.mxu0 0.0
    %312 = vmatprep.subr.mxu0 0.0
    %313 = vmatpush2.msra.mxu0 0.0
    %314 = vmatprep.subr.mxu0 0.0
    %315 = vmatpush2.msra.mxu0 0.0
    %316 = vmatprep.subr.mxu0 0.0
    %317 = vmatpush2.msra.mxu0 0.0
    %318 = vmatprep.subr.mxu0 0.0
    %319 = vmatpush2.msra.mxu0 0.0
    %320 = vmatprep.subr.mxu0 0.0
    %321 = vmatpush2.msra.mxu0 0.0
    %322 = vmatprep.subr.mxu0 0.0
    %323 = vmatpush2.msra.mxu0 0.0
    %324 = vmatprep.subr.mxu0 0.0
    %325 = vmatpush2.msra.mxu0 0.0
    %326 = vmatprep.mubr.f32.mxu0 0.0
    %327 = vmatmul.mubr.f32.gmra.mxu0 %v256
    %v328 = vpop.f32.mrf.mxu0
    %v329 = vadd.f32 0.0, %v328
    %v330 = vpop.f32.mrf.mxu0
    %331 = vdwg.mxu0
    %v444 = vunpack.c.l.b16 %v139
    %v445 = vunpack.c.l.b16 %v140
    %v446 = vunpack.c.l.b16 %v141
    %v447 = vunpack.c.l.b16 %v142
    %v448 = vunpack.c.l.b16 %v143
    %v449 = vunpack.c.l.b16 %v144
    %v450 = vunpack.c.l.b16 %v145
    %v451 = vunpack.c.l.b16 %v146
    %v452 = vunpack.c.l.b16 %v147
    %v453 = vunpack.c.l.b16 %v148
    %v454 = vunpack.c.l.b16 %v149
    %v455 = vunpack.c.l.b16 %v150
    %v456 = vunpack.c.l.b16 %v151
    %v457 = vunpack.c.l.b16 %v152
    %v458 = vunpack.c.l.b16 %v153
    %v459 = vunpack.c.l.b16 %v154
    %v460 = vunpack.c.l.b16 %v155
    %v461 = vunpack.c.l.b16 %v156
    %v462 = vunpack.c.l.b16 %v157
    %v463 = vunpack.c.l.b16 %v158
    %v464 = vunpack.c.l.b16 %v159
    %v465 = vunpack.c.l.b16 %v160
    %v466 = vunpack.c.l.b16 %v161
    %v467 = vunpack.c.l.b16 %v162
    %v468 = vunpack.c.l.b16 %v163
    %v469 = vunpack.c.l.b16 %v164
    %v470 = vunpack.c.l.b16 %v165
    %v471 = vunpack.c.l.b16 %v166
    %v472 = vunpack.c.l.b16 %v167
    %v473 = vunpack.c.l.b16 %v168
    %v474 = vunpack.c.l.b16 %v169
    %v475 = vunpack.c.l.b16 %v170
    %v476 = vunpack.c.l.b16 %v171
    %v477 = vunpack.c.l.b16 %v172
    %v478 = vunpack.c.l.b16 %v173
    %v479 = vunpack.c.l.b16 %v174
    %v480 = vunpack.c.l.b16 %v175
    %v481 = vunpack.c.l.b16 %v176
    %v482 = vunpack.c.l.b16 %v177
    %v483 = vunpack.c.l.b16 %v178
    %v484 = vunpack.c.l.b16 %v179
    %v485 = vunpack.c.l.b16 %v180
    %v486 = vunpack.c.l.b16 %v181
    %v487 = vunpack.c.l.b16 %v182
    %v488 = vunpack.c.l.b16 %v183
    %v489 = vunpack.c.l.b16 %v184
    %v490 = vunpack.c.l.b16 %v185
    %v491 = vunpack.c.l.b16 %v186
    %v492 = vunpack.c.l.b16 %v187
    %v493 = vunpack.c.l.b16 %v188
    %v494 = vunpack.c.l.b16 %v189
    %v495 = vunpack.c.l.b16 %v190
    %v496 = vunpack.c.l.b16 %v191
    %v497 = vunpack.c.l.b16 %v192
    %v498 = vunpack.c.l.b16 %v193
    %v499 = vunpack.c.l.b16 %v194
    %v500 = vunpack.c.l.b16 %v195
    %v501 = vunpack.c.l.b16 %v196
    %v502 = vunpack.c.l.b16 %v197
    %v503 = vunpack.c.l.b16 %v198
    %v504 = vunpack.c.l.b16 %v199
    %v505 = vunpack.c.l.b16 %v200
    %v506 = vunpack.c.l.b16 %v201
    %v507 = vunpack.c.l.b16 %v202
    %v508 = vunpack.c.l.b16 %v203
    %v509 = vunpack.c.l.b16 %v204
    %v510 = vunpack.c.l.b16 %v205
    %v511 = vunpack.c.l.b16 %v206
    %v512 = vunpack.c.l.b16 %v207
    %v513 = vunpack.c.l.b16 %v208
    %v514 = vunpack.c.l.b16 %v209
    %v515 = vunpack.c.l.b16 %v210
    %v516 = vunpack.c.l.b16 %v211
    %v517 = vunpack.c.l.b16 %v212
    %v518 = vunpack.c.l.b16 %v213
    %v519 = vunpack.c.l.b16 %v214
    %v520 = vunpack.c.l.b16 %v215
    %v521 = vunpack.c.l.b16 %v216
    %v522 = vunpack.c.l.b16 %v217
    %v523 = vunpack.c.l.b16 %v218
    %v524 = vunpack.c.l.b16 %v219
    %v525 = vunpack.c.l.b16 %v220
    %v526 = vunpack.c.l.b16 %v221
    %v527 = vunpack.c.l.b16 %v222
    %v528 = vunpack.c.l.b16 %v223
    %v529 = vunpack.c.l.b16 %v224
    %v530 = vunpack.c.l.b16 %v225
    %v531 = vunpack.c.l.b16 %v226
    %v532 = vunpack.c.l.b16 %v227
    %v533 = vunpack.c.l.b16 %v228
    %v534 = vunpack.c.l.b16 %v229
    %v535 = vunpack.c.l.b16 %v230
    %v536 = vunpack.c.l.b16 %v231
    %v537 = vunpack.c.l.b16 %v232
    %v538 = vunpack.c.l.b16 %v233
    %v539 = vunpack.c.l.b16 %v234
    %v540 = vunpack.c.l.b16 %v235
    %v541 = vunpack.c.l.b16 %v236
    %v542 = vunpack.c.l.b16 %v237
    %v543 = vunpack.c.l.b16 %v238
    %v544 = vunpack.c.l.b16 %v239
    %v545 = vunpack.c.l.b16 %v240
    %v546 = vunpack.c.l.b16 %v241
    %v547 = vunpack.c.l.b16 %v242
    %v548 = vunpack.c.l.b16 %v243
    %v549 = vunpack.c.l.b16 %v244
    %v550 = vunpack.c.l.b16 %v245
    %v551 = vunpack.c.l.b16 %v246
    %v552 = vunpack.c.l.b16 %v247
    %v553 = vunpack.c.l.b16 %v248
    %v554 = vunpack.c.l.b16 %v249
    %v555 = vunpack.c.l.b16 %v250
    %v556 = vpack.c.b16 %v445, %v444
    %v557 = vpack.c.b16 %v447, %v446
    %v558 = vpack.c.b16 %v449, %v448
    %v559 = vpack.c.b16 %v451, %v450
    %v560 = vpack.c.b16 %v453, %v452
    %v561 = vpack.c.b16 %v455, %v454
    %v562 = vpack.c.b16 %v457, %v456
    %v563 = vpack.c.b16 %v459, %v458
    %v564 = vpack.c.b16 %v461, %v460
    %v565 = vpack.c.b16 %v463, %v462
    %v566 = vpack.c.b16 %v465, %v464
    %v567 = vpack.c.b16 %v467, %v466
    %v568 = vpack.c.b16 %v469, %v468
    %v569 = vpack.c.b16 %v471, %v470
    %v570 = vpack.c.b16 %v473, %v472
    %v571 = vpack.c.b16 %v475, %v474
    %v572 = vpack.c.b16 %v477, %v476
    %v573 = vpack.c.b16 %v479, %v478
    %v574 = vpack.c.b16 %v481, %v480
    %v575 = vpack.c.b16 %v483, %v482
    %v576 = vpack.c.b16 %v485, %v484
    %v577 = vpack.c.b16 %v487, %v486
    %v578 = vpack.c.b16 %v489, %v488
    %v579 = vpack.c.b16 %v491, %v490
    %v580 = vpack.c.b16 %v493, %v492
    %v581 = vpack.c.b16 %v495, %v494
    %v582 = vpack.c.b16 %v497, %v496
    %v583 = vpack.c.b16 %v499, %v498
    %v584 = vpack.c.b16 %v501, %v500
    %v585 = vpack.c.b16 %v503, %v502
    %v586 = vpack.c.b16 %v505, %v504
    %v587 = vpack.c.b16 %v507, %v506
    %v588 = vpack.c.b16 %v509, %v508
    %v589 = vpack.c.b16 %v511, %v510
    %v590 = vpack.c.b16 %v513, %v512
    %v591 = vpack.c.b16 %v515, %v514
    %v592 = vpack.c.b16 %v517, %v516
    %v593 = vpack.c.b16 %v519, %v518
    %v594 = vpack.c.b16 %v521, %v520
    %v595 = vpack.c.b16 %v523, %v522
    %v596 = vpack.c.b16 %v525, %v524
    %v597 = vpack.c.b16 %v527, %v526
    %v598 = vpack.c.b16 %v529, %v528
    %v599 = vpack.c.b16 %v531, %v530
    %v600 = vpack.c.b16 %v533, %v532
    %v601 = vpack.c.b16 %v535, %v534
    %v602 = vpack.c.b16 %v537, %v536
    %v603 = vpack.c.b16 %v539, %v538
    %v604 = vpack.c.b16 %v541, %v540
    %v605 = vpack.c.b16 %v543, %v542
    %v606 = vpack.c.b16 %v545, %v544
    %v607 = vpack.c.b16 %v547, %v546
    %v608 = vpack.c.b16 %v549, %v548
    %v609 = vpack.c.b16 %v551, %v550
    %v610 = vpack.c.b16 %v553, %v552
    %v611 = vpack.c.b16 %v555, %v554
    %668 = vmatprep.subr.bf16.mxu0 0
    %669 = vmatpush1.bf16.msra.mxu0 %v563
    %670 = vmatprep.subr.bf16.mxu0 0
    %671 = vmatpush1.bf16.msra.mxu0 %v562
    %672 = vmatprep.subr.bf16.mxu0 0
    %673 = vmatpush1.bf16.msra.mxu0 %v561
    %674 = vmatprep.subr.bf16.mxu0 0
    %675 = vmatpush1.bf16.msra.mxu0 %v560
    %676 = vmatprep.subr.bf16.mxu0 0
    %677 = vmatpush1.bf16.msra.mxu0 %v559
    %678 = vmatprep.subr.bf16.mxu0 0
    %679 = vmatpush1.bf16.msra.mxu0 %v558
    %680 = vmatprep.subr.bf16.mxu0 0
    %681 = vmatpush1.bf16.msra.mxu0 %v557
    %682 = vmatprep.subr.bf16.mxu0 0
    %683 = vmatpush1.bf16.msra.mxu0 %v556
    %684 = vmatprep.subr.bf16.mxu0 0
    %685 = vmatpush2.bf16.msra.mxu0 %v571
    %686 = vmatprep.subr.bf16.mxu0 0
    %687 = vmatpush2.bf16.msra.mxu0 %v570
    %688 = vmatprep.subr.bf16.mxu0 0
    %689 = vmatpush2.bf16.msra.mxu0 %v569
    %690 = vmatprep.subr.bf16.mxu0 0
    %691 = vmatpush2.bf16.msra.mxu0 %v568
    %692 = vmatprep.subr.bf16.mxu0 0
    %693 = vmatpush2.bf16.msra.mxu0 %v567
    %694 = vmatprep.subr.bf16.mxu0 0
    %695 = vmatpush2.bf16.msra.mxu0 %v566
    %696 = vmatprep.subr.bf16.mxu0 0
    %697 = vmatpush2.bf16.msra.mxu0 %v565
    %698 = vmatprep.subr.bf16.mxu0 0
    %699 = vmatpush2.bf16.msra.mxu0 %v564
    %700 = vmatprep.mubr.bf16.mxu0 %v117
    %701 = vmatmul.mubr.bf16.gmra.mxu0 %v113
    %v702 = vpop.f32.mrf.mxu0
    %v703 = vadd.f32 %v329, %v702
    %v704 = vpop.f32.mrf.mxu0
    %v705 = vpop.f32.mrf.mxu0
    %v706 = vpop.f32.mrf.mxu0
    %707 = vdwg.mxu0
    %708 = vmatprep.subr.bf16.mxu0 0
    %709 = vmatpush1.bf16.msra.mxu0 %v579
    %710 = vmatprep.subr.bf16.mxu0 0
    %711 = vmatpush1.bf16.msra.mxu0 %v578
    %712 = vmatprep.subr.bf16.mxu0 0
    %713 = vmatpush1.bf16.msra.mxu0 %v577
    %714 = vmatprep.subr.bf16.mxu0 0
    %715 = vmatpush1.bf16.msra.mxu0 %v576
    %716 = vmatprep.subr.bf16.mxu0 0
    %717 = vmatpush1.bf16.msra.mxu0 %v575
    %718 = vmatprep.subr.bf16.mxu0 0
    %719 = vmatpush1.bf16.msra.mxu0 %v574
    %720 = vmatprep.subr.bf16.mxu0 0
    %721 = vmatpush1.bf16.msra.mxu0 %v573
    %722 = vmatprep.subr.bf16.mxu0 0
    %723 = vmatpush1.bf16.msra.mxu0 %v572
    %724 = vmatprep.subr.bf16.mxu0 0
    %725 = vmatpush2.bf16.msra.mxu0 %v587
    %726 = vmatprep.subr.bf16.mxu0 0
    %727 = vmatpush2.bf16.msra.mxu0 %v586
    %728 = vmatprep.subr.bf16.mxu0 0
    %729 = vmatpush2.bf16.msra.mxu0 %v585
    %730 = vmatprep.subr.bf16.mxu0 0
    %731 = vmatpush2.bf16.msra.mxu0 %v584
    %732 = vmatprep.subr.bf16.mxu0 0
    %733 = vmatpush2.bf16.msra.mxu0 %v583
    %734 = vmatprep.subr.bf16.mxu0 0
    %735 = vmatpush2.bf16.msra.mxu0 %v582
    %736 = vmatprep.subr.bf16.mxu0 0
    %737 = vmatpush2.bf16.msra.mxu0 %v581
    %738 = vmatprep.subr.bf16.mxu0 0
    %739 = vmatpush2.bf16.msra.mxu0 %v580
    %740 = vmatprep.mubr.bf16.mxu0 %v125
    %741 = vmatmul.mubr.bf16.gmra.mxu0 %v121
    %v742 = vpop.f32.mrf.mxu0
    %v743 = vadd.f32 %v703, %v742
    %v744 = vpop.f32.mrf.mxu0
    %v745 = vpop.f32.mrf.mxu0
    %v746 = vpop.f32.mrf.mxu0
    %747 = vdwg.mxu0
    %748 = vmatprep.subr.bf16.mxu0 0
    %749 = vmatpush1.bf16.msra.mxu0 %v595
    %750 = vmatprep.subr.bf16.mxu0 0
    %751 = vmatpush1.bf16.msra.mxu0 %v594
    %752 = vmatprep.subr.bf16.mxu0 0
    %753 = vmatpush1.bf16.msra.mxu0 %v593
    %754 = vmatprep.subr.bf16.mxu0 0
    %755 = vmatpush1.bf16.msra.mxu0 %v592
    %756 = vmatprep.subr.bf16.mxu0 0
    %757 = vmatpush1.bf16.msra.mxu0 %v591
    %758 = vmatprep.subr.bf16.mxu0 0
    %759 = vmatpush1.bf16.msra.mxu0 %v590
    %760 = vmatprep.subr.bf16.mxu0 0
    %761 = vmatpush1.bf16.msra.mxu0 %v589
    %762 = vmatprep.subr.bf16.mxu0 0
    %763 = vmatpush1.bf16.msra.mxu0 %v588
    %764 = vmatprep.subr.bf16.mxu0 0
    %765 = vmatpush2.bf16.msra.mxu0 %v603
    %766 = vmatprep.subr.bf16.mxu0 0
    %767 = vmatpush2.bf16.msra.mxu0 %v602
    %768 = vmatprep.subr.bf16.mxu0 0
    %769 = vmatpush2.bf16.msra.mxu0 %v601
    %770 = vmatprep.subr.bf16.mxu0 0
    %771 = vmatpush2.bf16.msra.mxu0 %v600
    %772 = vmatprep.subr.bf16.mxu0 0
    %773 = vmatpush2.bf16.msra.mxu0 %v599
    %774 = vmatprep.subr.bf16.mxu0 0
    %775 = vmatpush2.bf16.msra.mxu0 %v598
    %776 = vmatprep.subr.bf16.mxu0 0
    %777 = vmatpush2.bf16.msra.mxu0 %v597
    %778 = vmatprep.subr.bf16.mxu0 0
    %779 = vmatpush2.bf16.msra.mxu0 %v596
    %780 = vmatprep.mubr.bf16.mxu0 %v133
    %781 = vmatmul.mubr.bf16.gmra.mxu0 %v129
    %v782 = vpop.f32.mrf.mxu0
    %v783 = vadd.f32 %v743, %v782
    %v784 = vpop.f32.mrf.mxu0
    %v785 = vpop.f32.mrf.mxu0
    %v786 = vpop.f32.mrf.mxu0
    %787 = vdwg.mxu0
    %788 = vmatprep.subr.bf16.mxu0 0
    %789 = vmatpush1.bf16.msra.mxu0 %v611
    %790 = vmatprep.subr.bf16.mxu0 0
    %791 = vmatpush1.bf16.msra.mxu0 %v610
    %792 = vmatprep.subr.bf16.mxu0 0
    %793 = vmatpush1.bf16.msra.mxu0 %v609
    %794 = vmatprep.subr.bf16.mxu0 0
    %795 = vmatpush1.bf16.msra.mxu0 %v608
    %796 = vmatprep.subr.bf16.mxu0 0
    %797 = vmatpush1.bf16.msra.mxu0 %v607
    %798 = vmatprep.subr.bf16.mxu0 0
    %799 = vmatpush1.bf16.msra.mxu0 %v606
    %800 = vmatprep.subr.bf16.mxu0 0
    %801 = vmatpush1.bf16.msra.mxu0 %v605
    %802 = vmatprep.subr.bf16.mxu0 0
    %803 = vmatpush1.bf16.msra.mxu0 %v604
    %804 = vmatprep.subr.bf16.mxu0 0
    %805 = vmatpush2.bf16.msra.mxu0 0
    %806 = vmatprep.subr.bf16.mxu0 0
    %807 = vmatpush2.bf16.msra.mxu0 0
    %808 = vmatprep.subr.bf16.mxu0 0
    %809 = vmatpush2.bf16.msra.mxu0 0
    %810 = vmatprep.subr.bf16.mxu0 0
    %811 = vmatpush2.bf16.msra.mxu0 0
    %812 = vmatprep.subr.bf16.mxu0 0
    %813 = vmatpush2.bf16.msra.mxu0 0
    %814 = vmatprep.subr.bf16.mxu0 0
    %815 = vmatpush2.bf16.msra.mxu0 0
    %816 = vmatprep.subr.bf16.mxu0 0
    %817 = vmatpush2.bf16.msra.mxu0 0
    %818 = vmatprep.subr.bf16.mxu0 0
    %819 = vmatpush2.bf16.msra.mxu0 0
    %820 = vmatprep.mubr.bf16.mxu0 0
    %821 = vmatmul.mubr.bf16.gmra.mxu0 %v137
    %v822 = vpop.f32.mrf.mxu0
    %v823 = vadd.f32 %v783, %v822
    %v824 = vpop.f32.mrf.mxu0
    %v825 = vpop.f32.mrf.mxu0
    %v826 = vpop.f32.mrf.mxu0
    %827 = vdwg.mxu0
    %v828 = vld [vmem:[%s3] sm:$0x1]
    %v830 = vlaneseq
    %v831 = vshrl.u32 %v830, 7
    %v832 = vsub.s32 0, %v831
    %v833 = vrot.slane %v828, %v832
    %v835 = vadd.f32 %v823, %v833
    %v836 = vmax.f32 %v835, 0.0
    %v837 = vpack.c.bf16 %v836, %v836
    %v838 = vld [vmem:[%s4] sm:$0xf]
    %v839 = vld [vmem:[%s4 + $0x4] sm:$0xf]
    %v840 = vld [vmem:[%s4 + $0x8] sm:$0xf]
    %v841 = vld [vmem:[%s4 + $0xc] sm:$0xf]
    %v842 = vld [vmem:[%s4 + $0x10] sm:$0xf]
    %v843 = vld [vmem:[%s4 + $0x14] sm:$0xf]
    %v844 = vld [vmem:[%s4 + $0x18] sm:$0xf]
    %v845 = vld [vmem:[%s4 + $0x1c] sm:$0xf]
    %v846 = vld [vmem:[%s4 + $0x20] sm:$0xf]
    %v847 = vld [vmem:[%s4 + $0x24] sm:$0xf]
    %v848 = vld [vmem:[%s4 + $0x28] sm:$0xf]
    %v849 = vld [vmem:[%s4 + $0x2c] sm:$0xf]
    %v850 = vld [vmem:[%s4 + $0x30] sm:$0xf]
    %v851 = vld [vmem:[%s4 + $0x34] sm:$0xf]
    %v852 = vld [vmem:[%s4 + $0x38] sm:$0xf]
    %v853 = vld [vmem:[%s4 + $0x3c] sm:$0xf]
    %v854 = vld [vmem:[%s5] sm:$0x1]
    %v856 = vlaneseq
    %v857 = vshrl.u32 %v856, 7
    %v858 = vsub.s32 0, %v857
    %v859 = vrot.slane %v854, %v858
    %v877 = vunpack.c.l.b16 %v838
    %v878 = vunpack.c.l.b16 %v839
    %v879 = vunpack.c.l.b16 %v840
    %v880 = vunpack.c.l.b16 %v841
    %v881 = vunpack.c.l.b16 %v842
    %v882 = vunpack.c.l.b16 %v843
    %v883 = vunpack.c.l.b16 %v844
    %v884 = vunpack.c.l.b16 %v845
    %v885 = vunpack.c.l.b16 %v846
    %v886 = vunpack.c.l.b16 %v847
    %v887 = vunpack.c.l.b16 %v848
    %v888 = vunpack.c.l.b16 %v849
    %v889 = vunpack.c.l.b16 %v850
    %v890 = vunpack.c.l.b16 %v851
    %v891 = vunpack.c.l.b16 %v852
    %v892 = vunpack.c.l.b16 %v853
    %v893 = vpack.c.b16 %v878, %v877
    %v894 = vpack.c.b16 %v880, %v879
    %v895 = vpack.c.b16 %v882, %v881
    %v896 = vpack.c.b16 %v884, %v883
    %v897 = vpack.c.b16 %v886, %v885
    %v898 = vpack.c.b16 %v888, %v887
    %v899 = vpack.c.b16 %v890, %v889
    %v900 = vpack.c.b16 %v892, %v891
    %909 = vmatprep.subr.bf16.mxu0 0
    %910 = vmatpush1.bf16.msra.mxu0 %v900
    %911 = vmatprep.subr.bf16.mxu0 0
    %912 = vmatpush1.bf16.msra.mxu0 %v899
    %913 = vmatprep.subr.bf16.mxu0 0
    %914 = vmatpush1.bf16.msra.mxu0 %v898
    %915 = vmatprep.subr.bf16.mxu0 0
    %916 = vmatpush1.bf16.msra.mxu0 %v897
    %917 = vmatprep.subr.bf16.mxu0 0
    %918 = vmatpush1.bf16.msra.mxu0 %v896
    %919 = vmatprep.subr.bf16.mxu0 0
    %920 = vmatpush1.bf16.msra.mxu0 %v895
    %921 = vmatprep.subr.bf16.mxu0 0
    %922 = vmatpush1.bf16.msra.mxu0 %v894
    %923 = vmatprep.subr.bf16.mxu0 0
    %924 = vmatpush1.bf16.msra.mxu0 %v893
    %925 = vmatprep.subr.bf16.mxu0 0
    %926 = vmatpush2.bf16.msra.mxu0 0
    %927 = vmatprep.subr.bf16.mxu0 0
    %928 = vmatpush2.bf16.msra.mxu0 0
    %929 = vmatprep.subr.bf16.mxu0 0
    %930 = vmatpush2.bf16.msra.mxu0 0
    %931 = vmatprep.subr.bf16.mxu0 0
    %932 = vmatpush2.bf16.msra.mxu0 0
    %933 = vmatprep.subr.bf16.mxu0 0
    %934 = vmatpush2.bf16.msra.mxu0 0
    %935 = vmatprep.subr.bf16.mxu0 0
    %936 = vmatpush2.bf16.msra.mxu0 0
    %937 = vmatprep.subr.bf16.mxu0 0
    %938 = vmatpush2.bf16.msra.mxu0 0
    %939 = vmatprep.subr.bf16.mxu0 0
    %940 = vmatpush2.bf16.msra.mxu0 0
    %941 = vmatprep.mubr.bf16.mxu0 0
    %942 = vmatmul.mubr.bf16.gmra.mxu0 %v837
    %v943 = vpop.f32.mrf.mxu0
    %v944 = vadd.f32 %v859, %v943
    %v945 = vpop.f32.mrf.mxu0
    %v946 = vpop.f32.mrf.mxu0
    %v947 = vpop.f32.mrf.mxu0
    %948 = vdwg.mxu0
    %v949 = vmax.f32 %v944, 0.0
    %v950 = vld [vmem:[%s6] sm:$0x1]
    %v952 = vlaneseq
    %v953 = vshrl.u32 %v952, 7
    %v954 = vsub.s32 0, %v953
    %v955 = vrot.slane %v950, %v954
    %v957 = vmul.f32 %v949, %v955
    %v958 = vsel %vm110, %v957, 0.0
    %959 = vadd.xlane.f32.xlu0 %v958
    %v960 = vpop.xlane.xlu0 %959
    %v961 = vld [vmem:[#allocation2] sm:$0x1]
    %v963 = vlaneseq
    %v964 = vshrl.u32 %v963, 7
    %v965 = vsub.s32 0, %v964
    %v966 = vrot.slane %v961, %v965
    %v968 = vadd.f32 %v960, %v966
    %vm969 = vcmask 7168
    %970 = vst.msk [vmem:[%s8] sm:$0xff] %vm969, %v968
    // Predicated region
    $region38: #{chess_eval_forward.1} parent=1 // pred_check
      _
    $region39: #{chess_eval_forward.1} parent=1 // pred_check_branch
      %972 = sbr.rel (0) target = $region41
    $region40: #{chess_eval_forward.1} parent=1 // pred_region
      _
    $region41: #{chess_eval_forward.1} parent=1 // pred_fallthru
      _
    // Predicated region
    $region42: #{chess_eval_forward.1} parent=1 // pred_check
      _
    $region43: #{chess_eval_forward.1} parent=1 // pred_check_branch
      %974 = sbr.rel (0) target = $region45
    $region44: #{chess_eval_forward.1} parent=1 // pred_region
      _
    $region45: #{chess_eval_forward.1} parent=1 // pred_fallthru
      _
    %975 = vsyncpa [#allocation4], 1

</llo_original>
